<compile_context>
chip_gen: v6e
topology: v6e:2x2x1
jax: 0.10.0
libtpu: 0.0.40
codegen_flags: <defaults>
</compile_context>

<pallas_src>
import functools

import jax
import jax.numpy as jnp
from jax.experimental import pallas as pl
from jax.experimental.pallas import tpu as pltpu


# ---------------------------------------------------------------------------
# Fused kernel:
#   a) dense objectness baseline  sum( SmoothL1(pobj, 0) * 0.75 )  over (N,H*W)
#   b) SIoU per candidate + masked reductions for iou_loss / cls_loss
#
# Candidate slab `packed` is (12, KR, 128) f32:
#   rows 0-3  raw regression head (pre-activation)
#   rows 4-5  grid cell coords (gi, gj)
#   rows 6-9  ground-truth box (cx, cy, w, h) in feature-map units
#   row  10   gathered probability of the target class
#   row  11   candidate validity mask {0, 1}
#
# TODO(synk): if M grows into the thousands (KR > ~16) the ~30 live (KR,128)
# temporaries exceed the 64-vreg file; add a grid axis over KR rows with a
# two-pass mean/threshold before that regime.
# ---------------------------------------------------------------------------
def _fused_kernel(packed_ref, pobj_ref, iouf_ref, sc_ref, *, W, H):
    eps = 1e-7

    # ---------------- dense objectness baseline ----------------
    p = pobj_ref[...].astype(jnp.float32)              # (N, H*W), exact size
    ap = jnp.abs(p)
    sc_ref[2] = jnp.sum(jnp.where(ap < 1.0, 0.5 * p * p, ap - 0.5) * 0.75)

    # ---------------- SIoU candidates ----------------
    px_raw = packed_ref[0]
    py_raw = packed_ref[1]
    pw_raw = packed_ref[2]
    ph_raw = packed_ref[3]
    gx = packed_ref[4]
    gy = packed_ref[5]
    tx = packed_ref[6]
    ty = packed_ref[7]
    tw = packed_ref[8]
    th = packed_ref[9]
    pcls = packed_ref[10]
    valid = packed_ref[11]

    # decode predicted box (matches torch: tanh offsets, sigmoid sizes)
    px = jnp.tanh(px_raw) + gx
    py = jnp.tanh(py_raw) + gy
    pw = jax.nn.sigmoid(pw_raw) * W
    ph = jax.nn.sigmoid(ph_raw) * H

    b1_x1, b1_x2 = px - pw * 0.5, px + pw * 0.5
    b1_y1, b1_y2 = py - ph * 0.5, py + ph * 0.5
    b2_x1, b2_x2 = tx - tw * 0.5, tx + tw * 0.5
    b2_y1, b2_y2 = ty - th * 0.5, ty + th * 0.5

    inter = (jnp.maximum(jnp.minimum(b1_x2, b2_x2) - jnp.maximum(b1_x1, b2_x1), 0.0) *
             jnp.maximum(jnp.minimum(b1_y2, b2_y2) - jnp.maximum(b1_y1, b2_y1), 0.0))
    w1, h1 = b1_x2 - b1_x1, b1_y2 - b1_y1 + eps
    w2, h2 = b2_x2 - b2_x1, b2_y2 - b2_y1 + eps
    union = w1 * h1 + w2 * h2 - inter + eps
    iou = inter * pl.reciprocal(union, approx=True)

    cw = jnp.maximum(b1_x2, b2_x2) - jnp.minimum(b1_x1, b2_x1)
    ch = jnp.maximum(b1_y2, b2_y2) - jnp.minimum(b1_y1, b2_y1)
    s_cw = (b2_x1 + b2_x2 - b1_x1 - b1_x2) * 0.5
    s_ch = (b2_y1 + b2_y2 - b1_y1 - b1_y2) * 0.5
    # eps guards the 0/0 NaN when predicted and target centers coincide.
    inv_sigma = pl.reciprocal(jnp.sqrt(s_cw * s_cw + s_ch * s_ch) + eps, approx=True)
    sin_a1 = jnp.abs(s_cw) * inv_sigma
    sin_a2 = jnp.abs(s_ch) * inv_sigma
    thr = 0.7071067811865476
    sin_a = jnp.where(sin_a1 > thr, sin_a2, sin_a1)
    # cos(2*arcsin(x) - pi/2) == 2*x*sqrt(1-x^2)  (exact identity; avoids arcsin)
    angle_cost = 2.0 * sin_a * jnp.sqrt(jnp.maximum(1.0 - sin_a * sin_a, 0.0))
    rho_x = (s_cw * pl.reciprocal(cw, approx=True)) ** 2
    rho_y = (s_ch * pl.reciprocal(ch, approx=True)) ** 2
    gamma = angle_cost - 2.0
    distance_cost = 2.0 - jnp.exp(gamma * rho_x) - jnp.exp(gamma * rho_y)
    om_w = jnp.abs(w1 - w2) * pl.reciprocal(jnp.maximum(w1, w2), approx=True)
    om_h = jnp.abs(h1 - h2) * pl.reciprocal(jnp.maximum(h1, h2), approx=True)
    shape_cost = (1.0 - jnp.exp(-om_w)) ** 4 + (1.0 - jnp.exp(-om_h)) ** 4
    siou = iou - 0.5 * (distance_cost + shape_cost)              # (KR, 128)

    vmask = valid > 0.0
    # max(., 1) guards the all-invalid / nothing-selected degenerate cases
    # (strict PyTorch would produce NaN there).
    n_valid = jnp.maximum(jnp.sum(valid), 1.0)
    iou_mean = jnp.sum(jnp.where(vmask, siou, 0.0)) / n_valid

    fmask = jnp.logical_and(siou > iou_mean, vmask)              # f = iou > iou.mean()
    fmask_f = fmask.astype(jnp.float32)
    inv_n_sel = 1.0 / jnp.maximum(jnp.sum(fmask_f), 1.0)

    iou_loss = jnp.sum(jnp.where(fmask, 1.0 - siou, 0.0)) * inv_n_sel
    # NLLLoss on log-probs of the target class (log only on selected lanes)
    cls_loss = -jnp.sum(jnp.log(jnp.where(fmask, pcls, 1.0))) * inv_n_sel

    iouf_ref[0, :, :] = siou
    iouf_ref[1, :, :] = fmask_f
    sc_ref[0] = iou_loss
    sc_ref[1] = cls_loss


def _smooth_l1(d):
    ad = jnp.abs(d)
    return jnp.where(ad < 1.0, 0.5 * d * d, ad - 0.5)


def _detector_loss_impl(preds, targets):
    N, C, H, W = preds.shape
    HW = H * W
    L = N * HW
    M = targets.shape[0]

    # objectness channel straight out of NCHW (no full-tensor transpose, no pad)
    pobj2d = preds[:, 0].reshape(N, HW)                           # (N, H*W), native dtype

    obj_corr = jnp.float32(0.0)

    if M > 0:
        # ---------------- build_target (plain-JAX glue) ----------------
        scale = jnp.array([1.0, 1.0, W, H, W, H], jnp.float32)
        gt = targets.astype(jnp.float32) * scale                  # (M, 6)
        quadrant = jnp.array([[0, 0], [1, 0], [0, 1], [1, 1]], jnp.int32)
        cxy = gt[:, 2:4].astype(jnp.int32)                        # trunc == floor (coords > 0)
        gij = cxy[None, :, :] + quadrant[:, None, :]              # (4, M, 2)
        # TODO(synk): torch bounds both gi and gj with H; inherited for parity
        # even though it is wrong for non-square heads (W != H).
        valid = jnp.where(gij < H, gij, 0).min(axis=-1) > 0       # (4, M)
        K = 4 * M
        gi = gij[..., 0].reshape(K)
        gj = gij[..., 1].reshape(K)
        b = jnp.broadcast_to(gt[:, 0].astype(jnp.int32)[None, :], (4, M)).reshape(K)
        gbox = jnp.broadcast_to(gt[:, 2:][None, :, :], (4, M, 4)).reshape(K, 4)
        gcls = jnp.broadcast_to(gt[:, 1].astype(jnp.int32)[None, :], (4, M)).reshape(K)
        valid = valid.reshape(K)

        bc = jnp.clip(b, 0, N - 1)
        gic = jnp.clip(gi, 0, W - 1)
        gjc = jnp.clip(gj, 0, H - 1)
        gclsc = jnp.clip(gcls, 0, C - 6)

        # ONE combined gather from NCHW: per-candidate channel index
        # [0, 1, 2, 3, 4, 5+cls] -> columns [pobj, reg0..reg3, pcls_target].
        ch_idx = jnp.concatenate(
            [jnp.broadcast_to(jnp.arange(5, dtype=jnp.int32)[None, :], (K, 5)),
             (5 + gclsc)[:, None]], axis=1)                       # (K, 6)
        g = preds[bc[:, None], ch_idx, gjc[:, None], gic[:, None]].astype(jnp.float32)
        pobj_g = g[:, 0]                                          # (K,)
        preg_g = g[:, 1:5]                                        # (K, 4)
        pcls_g = g[:, 5]                                          # (K,)

        # pack candidate components into one lane-dense slab (single DMA).
        KR = max(1, -(-K // 128))
        Kpad = KR * 128
        comp = jnp.concatenate([
            preg_g.T,                                             # rows 0-3
            gi.astype(jnp.float32)[None, :],                      # row  4
            gj.astype(jnp.float32)[None, :],                      # row  5
            gbox.T,                                               # rows 6-9
            pcls_g[None, :],                                      # row 10
            valid.astype(jnp.float32)[None, :],                   # row 11
        ], axis=0)                                                # (12, K)
        packed = jnp.pad(comp, ((0, 0), (0, Kpad - K))).reshape(12, KR, 128)
    else:
        K = 0
        KR = 1
        packed = jnp.zeros((12, 1, 128), jnp.float32)             # all-invalid dummy

    # ---------------- single fused Pallas launch ----------------
    kern = functools.partial(_fused_kernel, W=float(W), H=float(H))
    cost = pl.CostEstimate(
        flops=int(80 * KR * 128 + 4 * L),
        transcendentals=int(12 * KR * 128),
        bytes_accessed=int(4 * 14 * KR * 128 + L * preds.dtype.itemsize + 16),
    )
    iouf, sc = pl.pallas_call(
        kern,
        out_shape=(
            jax.ShapeDtypeStruct((2, KR, 128), jnp.float32),      # [siou, fmask]
            jax.ShapeDtypeStruct((3,), jnp.float32),              # [iou_loss, cls_loss, obj_base]
        ),
        in_specs=[
            pl.BlockSpec(memory_space=pltpu.MemorySpace.VMEM),
            pl.BlockSpec(memory_space=pltpu.MemorySpace.VMEM),
        ],
        out_specs=(
            pl.BlockSpec(memory_space=pltpu.MemorySpace.VMEM),
            pl.BlockSpec(memory_space=pltpu.MemorySpace.SMEM),
        ),
        cost_estimate=cost,
    )(packed, pobj2d)

    iou_loss = sc[0]
    cls_loss = sc[1]
    obj_base = sc[2]

    if M > 0:
        # --------- sparse objectness correction (<= K cells, glue) ---------
        # The dense baseline assumes tobj = 0 / factor = 0.75 everywhere; swap
        # in the true tobj/factor at the selected cells. Duplicate cell writes
        # resolve last-write-wins (torch index_put semantics).
        iou_k = iouf[0].reshape(-1)[:K]
        fsel = iouf[1].reshape(-1)[:K] > 0.5

        lin = b * HW + gj * W + gi
        idx = jnp.arange(K)
        # TODO(synk): O(K^2) duplicate resolution; replace with a sort-based
        # winner pick if M reaches the hundreds.
        dup_later = ((lin[None, :] == lin[:, None])
                     & fsel[None, :]
                     & (idx[None, :] > idx[:, None]))
        winner = fsel & jnp.logical_not(jnp.any(dup_later, axis=1))

        b_sc = jnp.where(fsel, bc, N)                             # unselected -> OOB, dropped
        counts = jnp.zeros((N,), jnp.float32).at[b_sc].add(1.0, mode='drop')  # bincount(b[f])
        fac_k = HW / jnp.maximum(counts[bc], 1.0) * 0.25

        base_k = _smooth_l1(pobj_g) * 0.75
        new_k = _smooth_l1(pobj_g - iou_k) * fac_k
        obj_corr = jnp.sum(jnp.where(winner, new_k - base_k, 0.0))

    obj_loss = (obj_base + obj_corr) / L
    loss = iou_loss * 8.0 + obj_loss * 16.0 + cls_loss
    return iou_loss, obj_loss, cls_loss, loss


# M (targets.shape[0]) and the head shape are static under jit, so the Python
# branches above specialize per shape; this keeps the ~25 small glue HLOs from
# dispatching eagerly.
detector_loss = jax.jit(_detector_loss_impl)


if __name__ == "__main__":
    key = jax.random.PRNGKey(0)
    N, nc, H, W = 2, 4, 16, 16
    C = 5 + nc                     # [obj, 4 reg, nc class probs]
    k1, k2, k3, k4, k5 = jax.random.split(key, 5)

    raw = jax.random.normal(k1, (N, C, H, W), jnp.float32)
    # class channels of the detector head are probabilities (softmaxed), as the
    # loss applies log() + NLL to them.
    cls_prob = jax.nn.softmax(raw[:, 5:], axis=1)
    preds = jnp.concatenate([raw[:, :5], cls_prob], axis=1)       # (2,9,16,16) NCHW

    M = 6                                                         # targets: [b, cls, cx, cy, w, h]
    tb = jax.random.randint(k2, (M,), 0, N).astype(jnp.float32)
    tc = jax.random.randint(k3, (M,), 0, nc).astype(jnp.float32)
    txy = jax.random.uniform(k4, (M, 2), minval=0.15, maxval=0.85)
    twh = jax.random.uniform(k5, (M, 2), minval=0.05, maxval=0.3)
    targets = jnp.concatenate([tb[:, None], tc[:, None], txy, twh], axis=1)

    iou_l, obj_l, cls_l, loss = detector_loss(preds, targets)
    jax.block_until_ready(loss)
    assert bool(jnp.isfinite(loss)), "non-finite loss"
    print("KERNEL_OK")
</pallas_src>

<mosaic_0001>
module attributes {stable_mosaic.version = 11 : i64} {
  func.func private @main(%arg0: i32) attributes {dimension_semantics = [#tpu.dimension_semantics<core_parallel>], iteration_bounds = array<i64: 2>, tpu.core_type = #tpu.core_type<sc_scalar_subcore>, window_params = []} {
    return
  }
}

module attributes {stable_mosaic.version = 11 : i64} {
  func.func private @main(%arg0: i32) attributes {dimension_semantics = [#tpu.dimension_semantics<core_parallel>], iteration_bounds = array<i64: 2>, tpu.core_type = #tpu.core_type<sc_scalar_subcore>, window_params = []} {
    return
  }
}

module attributes {stable_mosaic.version = 11 : i64} {
  func.func @_fused_kernel(%arg0: memref<12x1x128xf32, #tpu.memory_space<vmem>>, %arg1: memref<2x256xf32, #tpu.memory_space<vmem>>, %arg2: memref<2x1x128xf32, #tpu.memory_space<vmem>>, %arg3: memref<3xf32, #tpu.memory_space<smem>>) attributes {dimension_semantics = [], scalar_prefetch = 0 : i64, scratch_operands = 0 : i64, tpu.core_type = #tpu.core_type<tc>} {
    %c0 = arith.constant 0 : index
    %c0_0 = arith.constant 0 : index
    %0 = vector.load %arg1[%c0, %c0_0] : memref<2x256xf32, #tpu.memory_space<vmem>>, vector<2x256xf32>
    %1 = math.absf %0 : vector<2x256xf32>
    %cst = arith.constant 1.000000e+00 : f32
    %2 = vector.broadcast %cst : f32 to vector<2x256xf32>
    %3 = arith.cmpf olt, %1, %2 : vector<2x256xf32>
    %cst_1 = arith.constant 5.000000e-01 : f32
    %4 = vector.broadcast %cst_1 : f32 to vector<2x256xf32>
    %5 = arith.mulf %4, %0 : vector<2x256xf32>
    %6 = arith.mulf %5, %0 : vector<2x256xf32>
    %cst_2 = arith.constant 5.000000e-01 : f32
    %7 = vector.broadcast %cst_2 : f32 to vector<2x256xf32>
    %8 = arith.subf %1, %7 : vector<2x256xf32>
    %9 = arith.select %3, %6, %8 : vector<2x256xi1>, vector<2x256xf32>
    %cst_3 = arith.constant 7.500000e-01 : f32
    %10 = vector.broadcast %cst_3 : f32 to vector<2x256xf32>
    %11 = arith.mulf %9, %10 : vector<2x256xf32>
    %12 = vector.shape_cast %11 : vector<2x256xf32> to vector<1x2x256xf32>
    %cst_4 = arith.constant dense<0.000000e+00> : vector<1xf32>
    %13 = vector.multi_reduction <add>, %12, %cst_4 [1, 2] : vector<1x2x256xf32> to vector<1xf32>
    %14 = vector.shape_cast %13 : vector<1xf32> to vector<1x1x1xf32>
    %15 = vector.extract %14[0, 0, 0] : f32 from vector<1x1x1xf32>
    %c2 = arith.constant 2 : index
    %16 = memref.load %arg3[%c2] : memref<3xf32, #tpu.memory_space<smem>>
    memref.store %15, %arg3[%c2] : memref<3xf32, #tpu.memory_space<smem>>
    %c0_5 = arith.constant 0 : index
    %c0_6 = arith.constant 0 : index
    %c0_7 = arith.constant 0 : index
    %17 = vector.load %arg0[%c0_5, %c0_6, %c0_7] : memref<12x1x128xf32, #tpu.memory_space<vmem>>, vector<1x1x128xf32>
    %18 = vector.shape_cast %17 : vector<1x1x128xf32> to vector<1x128xf32>
    %c1 = arith.constant 1 : index
    %c0_8 = arith.constant 0 : index
    %c0_9 = arith.constant 0 : index
    %19 = vector.load %arg0[%c1, %c0_8, %c0_9] : memref<12x1x128xf32, #tpu.memory_space<vmem>>, vector<1x1x128xf32>
    %20 = vector.shape_cast %19 : vector<1x1x128xf32> to vector<1x128xf32>
    %c2_10 = arith.constant 2 : index
    %c0_11 = arith.constant 0 : index
    %c0_12 = arith.constant 0 : index
    %21 = vector.load %arg0[%c2_10, %c0_11, %c0_12] : memref<12x1x128xf32, #tpu.memory_space<vmem>>, vector<1x1x128xf32>
    %22 = vector.shape_cast %21 : vector<1x1x128xf32> to vector<1x128xf32>
    %c3 = arith.constant 3 : index
    %c0_13 = arith.constant 0 : index
    %c0_14 = arith.constant 0 : index
    %23 = vector.load %arg0[%c3, %c0_13, %c0_14] : memref<12x1x128xf32, #tpu.memory_space<vmem>>, vector<1x1x128xf32>
    %24 = vector.shape_cast %23 : vector<1x1x128xf32> to vector<1x128xf32>
    %c4 = arith.constant 4 : index
    %c0_15 = arith.constant 0 : index
    %c0_16 = arith.constant 0 : index
    %25 = vector.load %arg0[%c4, %c0_15, %c0_16] : memref<12x1x128xf32, #tpu.memory_space<vmem>>, vector<1x1x128xf32>
    %26 = vector.shape_cast %25 : vector<1x1x128xf32> to vector<1x128xf32>
    %c5 = arith.constant 5 : index
    %c0_17 = arith.constant 0 : index
    %c0_18 = arith.constant 0 : index
    %27 = vector.load %arg0[%c5, %c0_17, %c0_18] : memref<12x1x128xf32, #tpu.memory_space<vmem>>, vector<1x1x128xf32>
    %28 = vector.shape_cast %27 : vector<1x1x128xf32> to vector<1x128xf32>
    %c6 = arith.constant 6 : index
    %c0_19 = arith.constant 0 : index
    %c0_20 = arith.constant 0 : index
    %29 = vector.load %arg0[%c6, %c0_19, %c0_20] : memref<12x1x128xf32, #tpu.memory_space<vmem>>, vector<1x1x128xf32>
    %30 = vector.shape_cast %29 : vector<1x1x128xf32> to vector<1x128xf32>
    %c7 = arith.constant 7 : index
    %c0_21 = arith.constant 0 : index
    %c0_22 = arith.constant 0 : index
    %31 = vector.load %arg0[%c7, %c0_21, %c0_22] : memref<12x1x128xf32, #tpu.memory_space<vmem>>, vector<1x1x128xf32>
    %32 = vector.shape_cast %31 : vector<1x1x128xf32> to vector<1x128xf32>
    %c8 = arith.constant 8 : index
    %c0_23 = arith.constant 0 : index
    %c0_24 = arith.constant 0 : index
    %33 = vector.load %arg0[%c8, %c0_23, %c0_24] : memref<12x1x128xf32, #tpu.memory_space<vmem>>, vector<1x1x128xf32>
    %34 = vector.shape_cast %33 : vector<1x1x128xf32> to vector<1x128xf32>
    %c9 = arith.constant 9 : index
    %c0_25 = arith.constant 0 : index
    %c0_26 = arith.constant 0 : index
    %35 = vector.load %arg0[%c9, %c0_25, %c0_26] : memref<12x1x128xf32, #tpu.memory_space<vmem>>, vector<1x1x128xf32>
    %36 = vector.shape_cast %35 : vector<1x1x128xf32> to vector<1x128xf32>
    %c10 = arith.constant 10 : index
    %c0_27 = arith.constant 0 : index
    %c0_28 = arith.constant 0 : index
    %37 = vector.load %arg0[%c10, %c0_27, %c0_28] : memref<12x1x128xf32, #tpu.memory_space<vmem>>, vector<1x1x128xf32>
    %38 = vector.shape_cast %37 : vector<1x1x128xf32> to vector<1x128xf32>
    %c11 = arith.constant 11 : index
    %c0_29 = arith.constant 0 : index
    %c0_30 = arith.constant 0 : index
    %39 = vector.load %arg0[%c11, %c0_29, %c0_30] : memref<12x1x128xf32, #tpu.memory_space<vmem>>, vector<1x1x128xf32>
    %40 = vector.shape_cast %39 : vector<1x1x128xf32> to vector<1x128xf32>
    %41 = math.tanh %18 : vector<1x128xf32>
    %42 = arith.addf %41, %26 : vector<1x128xf32>
    %43 = math.tanh %20 : vector<1x128xf32>
    %44 = arith.addf %43, %28 : vector<1x128xf32>
    %45 = arith.negf %22 : vector<1x128xf32>
    %46 = math.exp %45 : vector<1x128xf32>
    %cst_31 = arith.constant 1.000000e+00 : f32
    %47 = vector.broadcast %cst_31 : f32 to vector<1x128xf32>
    %48 = arith.addf %47, %46 : vector<1x128xf32>
    %49 = arith.divf %47, %48 : vector<1x128xf32>
    %cst_32 = arith.constant 1.600000e+01 : f32
    %50 = vector.broadcast %cst_32 : f32 to vector<1x128xf32>
    %51 = arith.mulf %49, %50 : vector<1x128xf32>
    %52 = arith.negf %24 : vector<1x128xf32>
    %53 = math.exp %52 : vector<1x128xf32>
    %cst_33 = arith.constant 1.000000e+00 : f32
    %54 = vector.broadcast %cst_33 : f32 to vector<1x128xf32>
    %55 = arith.addf %54, %53 : vector<1x128xf32>
    %56 = arith.divf %54, %55 : vector<1x128xf32>
    %cst_34 = arith.constant 1.600000e+01 : f32
    %57 = vector.broadcast %cst_34 : f32 to vector<1x128xf32>
    %58 = arith.mulf %56, %57 : vector<1x128xf32>
    %cst_35 = arith.constant 5.000000e-01 : f32
    %59 = vector.broadcast %cst_35 : f32 to vector<1x128xf32>
    %60 = arith.mulf %51, %59 : vector<1x128xf32>
    %61 = arith.subf %42, %60 : vector<1x128xf32>
    %cst_36 = arith.constant 5.000000e-01 : f32
    %62 = vector.broadcast %cst_36 : f32 to vector<1x128xf32>
    %63 = arith.mulf %51, %62 : vector<1x128xf32>
    %64 = arith.addf %42, %63 : vector<1x128xf32>
    %cst_37 = arith.constant 5.000000e-01 : f32
    %65 = vector.broadcast %cst_37 : f32 to vector<1x128xf32>
    %66 = arith.mulf %58, %65 : vector<1x128xf32>
    %67 = arith.subf %44, %66 : vector<1x128xf32>
    %cst_38 = arith.constant 5.000000e-01 : f32
    %68 = vector.broadcast %cst_38 : f32 to vector<1x128xf32>
    %69 = arith.mulf %58, %68 : vector<1x128xf32>
    %70 = arith.addf %44, %69 : vector<1x128xf32>
    %cst_39 = arith.constant 5.000000e-01 : f32
    %71 = vector.broadcast %cst_39 : f32 to vector<1x128xf32>
    %72 = arith.mulf %34, %71 : vector<1x128xf32>
    %73 = arith.subf %30, %72 : vector<1x128xf32>
    %cst_40 = arith.constant 5.000000e-01 : f32
    %74 = vector.broadcast %cst_40 : f32 to vector<1x128xf32>
    %75 = arith.mulf %34, %74 : vector<1x128xf32>
    %76 = arith.addf %30, %75 : vector<1x128xf32>
    %cst_41 = arith.constant 5.000000e-01 : f32
    %77 = vector.broadcast %cst_41 : f32 to vector<1x128xf32>
    %78 = arith.mulf %36, %77 : vector<1x128xf32>
    %79 = arith.subf %32, %78 : vector<1x128xf32>
    %cst_42 = arith.constant 5.000000e-01 : f32
    %80 = vector.broadcast %cst_42 : f32 to vector<1x128xf32>
    %81 = arith.mulf %36, %80 : vector<1x128xf32>
    %82 = arith.addf %32, %81 : vector<1x128xf32>
    %83 = arith.minimumf %64, %76 : vector<1x128xf32>
    %84 = arith.maximumf %61, %73 : vector<1x128xf32>
    %85 = arith.subf %83, %84 : vector<1x128xf32>
    %cst_43 = arith.constant 0.000000e+00 : f32
    %86 = vector.broadcast %cst_43 : f32 to vector<1x128xf32>
    %87 = arith.maximumf %85, %86 : vector<1x128xf32>
    %88 = arith.minimumf %70, %82 : vector<1x128xf32>
    %89 = arith.maximumf %67, %79 : vector<1x128xf32>
    %90 = arith.subf %88, %89 : vector<1x128xf32>
    %cst_44 = arith.constant 0.000000e+00 : f32
    %91 = vector.broadcast %cst_44 : f32 to vector<1x128xf32>
    %92 = arith.maximumf %90, %91 : vector<1x128xf32>
    %93 = arith.mulf %87, %92 : vector<1x128xf32>
    %94 = arith.subf %64, %61 : vector<1x128xf32>
    %95 = arith.subf %70, %67 : vector<1x128xf32>
    %cst_45 = arith.constant 1.000000e-07 : f32
    %96 = vector.broadcast %cst_45 : f32 to vector<1x128xf32>
    %97 = arith.addf %95, %96 : vector<1x128xf32>
    %98 = arith.subf %76, %73 : vector<1x128xf32>
    %99 = arith.subf %82, %79 : vector<1x128xf32>
    %cst_46 = arith.constant 1.000000e-07 : f32
    %100 = vector.broadcast %cst_46 : f32 to vector<1x128xf32>
    %101 = arith.addf %99, %100 : vector<1x128xf32>
    %102 = arith.mulf %94, %97 : vector<1x128xf32>
    %103 = arith.mulf %98, %101 : vector<1x128xf32>
    %104 = arith.addf %102, %103 : vector<1x128xf32>
    %105 = arith.subf %104, %93 : vector<1x128xf32>
    %cst_47 = arith.constant 1.000000e-07 : f32
    %106 = vector.broadcast %cst_47 : f32 to vector<1x128xf32>
    %107 = arith.addf %105, %106 : vector<1x128xf32>
    %108 = tpu.reciprocal %107 {approx = true} : vector<1x128xf32> -> vector<1x128xf32>
    %109 = arith.mulf %93, %108 : vector<1x128xf32>
    %110 = arith.maximumf %64, %76 : vector<1x128xf32>
    %111 = arith.minimumf %61, %73 : vector<1x128xf32>
    %112 = arith.subf %110, %111 : vector<1x128xf32>
    %113 = arith.maximumf %70, %82 : vector<1x128xf32>
    %114 = arith.minimumf %67, %79 : vector<1x128xf32>
    %115 = arith.subf %113, %114 : vector<1x128xf32>
    %116 = arith.addf %73, %76 : vector<1x128xf32>
    %117 = arith.subf %116, %61 : vector<1x128xf32>
    %118 = arith.subf %117, %64 : vector<1x128xf32>
    %cst_48 = arith.constant 5.000000e-01 : f32
    %119 = vector.broadcast %cst_48 : f32 to vector<1x128xf32>
    %120 = arith.mulf %118, %119 : vector<1x128xf32>
    %121 = arith.addf %79, %82 : vector<1x128xf32>
    %122 = arith.subf %121, %67 : vector<1x128xf32>
    %123 = arith.subf %122, %70 : vector<1x128xf32>
    %cst_49 = arith.constant 5.000000e-01 : f32
    %124 = vector.broadcast %cst_49 : f32 to vector<1x128xf32>
    %125 = arith.mulf %123, %124 : vector<1x128xf32>
    %126 = arith.mulf %120, %120 : vector<1x128xf32>
    %127 = arith.mulf %125, %125 : vector<1x128xf32>
    %128 = arith.addf %126, %127 : vector<1x128xf32>
    %129 = math.sqrt %128 : vector<1x128xf32>
    %cst_50 = arith.constant 1.000000e-07 : f32
    %130 = vector.broadcast %cst_50 : f32 to vector<1x128xf32>
    %131 = arith.addf %129, %130 : vector<1x128xf32>
    %132 = tpu.reciprocal %131 {approx = true} : vector<1x128xf32> -> vector<1x128xf32>
    %133 = math.absf %120 : vector<1x128xf32>
    %134 = arith.mulf %133, %132 : vector<1x128xf32>
    %135 = math.absf %125 : vector<1x128xf32>
    %136 = arith.mulf %135, %132 : vector<1x128xf32>
    %cst_51 = arith.constant 0.707106769 : f32
    %137 = vector.broadcast %cst_51 : f32 to vector<1x128xf32>
    %138 = arith.cmpf ogt, %134, %137 : vector<1x128xf32>
    %139 = arith.select %138, %136, %134 : vector<1x128xi1>, vector<1x128xf32>
    %cst_52 = arith.constant 2.000000e+00 : f32
    %140 = vector.broadcast %cst_52 : f32 to vector<1x128xf32>
    %141 = arith.mulf %140, %139 : vector<1x128xf32>
    %142 = arith.mulf %139, %139 : vector<1x128xf32>
    %cst_53 = arith.constant 1.000000e+00 : f32
    %143 = vector.broadcast %cst_53 : f32 to vector<1x128xf32>
    %144 = arith.subf %143, %142 : vector<1x128xf32>
    %cst_54 = arith.constant 0.000000e+00 : f32
    %145 = vector.broadcast %cst_54 : f32 to vector<1x128xf32>
    %146 = arith.maximumf %144, %145 : vector<1x128xf32>
    %147 = math.sqrt %146 : vector<1x128xf32>
    %148 = arith.mulf %141, %147 : vector<1x128xf32>
    %149 = tpu.reciprocal %112 {approx = true} : vector<1x128xf32> -> vector<1x128xf32>
    %150 = arith.mulf %120, %149 : vector<1x128xf32>
    %151 = arith.mulf %150, %150 : vector<1x128xf32>
    %152 = tpu.reciprocal %115 {approx = true} : vector<1x128xf32> -> vector<1x128xf32>
    %153 = arith.mulf %125, %152 : vector<1x128xf32>
    %154 = arith.mulf %153, %153 : vector<1x128xf32>
    %cst_55 = arith.constant 2.000000e+00 : f32
    %155 = vector.broadcast %cst_55 : f32 to vector<1x128xf32>
    %156 = arith.subf %148, %155 : vector<1x128xf32>
    %157 = arith.mulf %156, %151 : vector<1x128xf32>
    %158 = math.exp %157 : vector<1x128xf32>
    %cst_56 = arith.constant 2.000000e+00 : f32
    %159 = vector.broadcast %cst_56 : f32 to vector<1x128xf32>
    %160 = arith.subf %159, %158 : vector<1x128xf32>
    %161 = arith.mulf %156, %154 : vector<1x128xf32>
    %162 = math.exp %161 : vector<1x128xf32>
    %163 = arith.subf %160, %162 : vector<1x128xf32>
    %164 = arith.subf %94, %98 : vector<1x128xf32>
    %165 = math.absf %164 : vector<1x128xf32>
    %166 = arith.maximumf %94, %98 : vector<1x128xf32>
    %167 = tpu.reciprocal %166 {approx = true} : vector<1x128xf32> -> vector<1x128xf32>
    %168 = arith.mulf %165, %167 : vector<1x128xf32>
    %169 = arith.subf %97, %101 : vector<1x128xf32>
    %170 = math.absf %169 : vector<1x128xf32>
    %171 = arith.maximumf %97, %101 : vector<1x128xf32>
    %172 = tpu.reciprocal %171 {approx = true} : vector<1x128xf32> -> vector<1x128xf32>
    %173 = arith.mulf %170, %172 : vector<1x128xf32>
    %cst_57 = arith.constant 0.000000e+00 : f32
    %174 = vector.broadcast %cst_57 : f32 to vector<1x128xf32>
    %175 = arith.subf %174, %168 : vector<1x128xf32>
    %176 = math.exp %175 : vector<1x128xf32>
    %cst_58 = arith.constant 1.000000e+00 : f32
    %177 = vector.broadcast %cst_58 : f32 to vector<1x128xf32>
    %178 = arith.subf %177, %176 : vector<1x128xf32>
    %179 = arith.mulf %178, %178 : vector<1x128xf32>
    %180 = arith.mulf %179, %179 : vector<1x128xf32>
    %cst_59 = arith.constant 0.000000e+00 : f32
    %181 = vector.broadcast %cst_59 : f32 to vector<1x128xf32>
    %182 = arith.subf %181, %173 : vector<1x128xf32>
    %183 = math.exp %182 : vector<1x128xf32>
    %cst_60 = arith.constant 1.000000e+00 : f32
    %184 = vector.broadcast %cst_60 : f32 to vector<1x128xf32>
    %185 = arith.subf %184, %183 : vector<1x128xf32>
    %186 = arith.mulf %185, %185 : vector<1x128xf32>
    %187 = arith.mulf %186, %186 : vector<1x128xf32>
    %188 = arith.addf %180, %187 : vector<1x128xf32>
    %189 = arith.addf %163, %188 : vector<1x128xf32>
    %cst_61 = arith.constant 5.000000e-01 : f32
    %190 = vector.broadcast %cst_61 : f32 to vector<1x128xf32>
    %191 = arith.mulf %190, %189 : vector<1x128xf32>
    %192 = arith.subf %109, %191 : vector<1x128xf32>
    %cst_62 = arith.constant 0.000000e+00 : f32
    %193 = vector.broadcast %cst_62 : f32 to vector<1x128xf32>
    %194 = arith.cmpf ogt, %40, %193 : vector<1x128xf32>
    %195 = vector.shape_cast %40 : vector<1x128xf32> to vector<1x1x128xf32>
    %cst_63 = arith.constant dense<0.000000e+00> : vector<1xf32>
    %196 = vector.multi_reduction <add>, %195, %cst_63 [1, 2] : vector<1x1x128xf32> to vector<1xf32>
    %197 = vector.shape_cast %196 : vector<1xf32> to vector<1x1x1xf32>
    %198 = vector.extract %197[0, 0, 0] : f32 from vector<1x1x1xf32>
    %cst_64 = arith.constant 1.000000e+00 : f32
    %199 = arith.maximumf %198, %cst_64 : f32
    %cst_65 = arith.constant 0.000000e+00 : f32
    %200 = vector.broadcast %cst_65 : f32 to vector<1x128xf32>
    %201 = arith.select %194, %192, %200 : vector<1x128xi1>, vector<1x128xf32>
    %202 = vector.shape_cast %201 : vector<1x128xf32> to vector<1x1x128xf32>
    %cst_66 = arith.constant dense<0.000000e+00> : vector<1xf32>
    %203 = vector.multi_reduction <add>, %202, %cst_66 [1, 2] : vector<1x1x128xf32> to vector<1xf32>
    %204 = vector.shape_cast %203 : vector<1xf32> to vector<1x1x1xf32>
    %205 = vector.extract %204[0, 0, 0] : f32 from vector<1x1x1xf32>
    %206 = arith.divf %205, %199 : f32
    %207 = vector.broadcast %206 : f32 to vector<1x128xf32>
    %208 = arith.cmpf ogt, %192, %207 : vector<1x128xf32>
    %209 = arith.andi %208, %194 : vector<1x128xi1>
    %210 = arith.extui %209 : vector<1x128xi1> to vector<1x128xi32>
    %211 = arith.sitofp %210 : vector<1x128xi32> to vector<1x128xf32>
    %212 = vector.shape_cast %211 : vector<1x128xf32> to vector<1x1x128xf32>
    %cst_67 = arith.constant dense<0.000000e+00> : vector<1xf32>
    %213 = vector.multi_reduction <add>, %212, %cst_67 [1, 2] : vector<1x1x128xf32> to vector<1xf32>
    %214 = vector.shape_cast %213 : vector<1xf32> to vector<1x1x1xf32>
    %215 = vector.extract %214[0, 0, 0] : f32 from vector<1x1x1xf32>
    %cst_68 = arith.constant 1.000000e+00 : f32
    %216 = arith.maximumf %215, %cst_68 : f32
    %cst_69 = arith.constant 1.000000e+00 : f32
    %217 = arith.divf %cst_69, %216 : f32
    %cst_70 = arith.constant 1.000000e+00 : f32
    %218 = vector.broadcast %cst_70 : f32 to vector<1x128xf32>
    %219 = arith.subf %218, %192 : vector<1x128xf32>
    %cst_71 = arith.constant 0.000000e+00 : f32
    %220 = vector.broadcast %cst_71 : f32 to vector<1x128xf32>
    %221 = arith.select %209, %219, %220 : vector<1x128xi1>, vector<1x128xf32>
    %222 = vector.shape_cast %221 : vector<1x128xf32> to vector<1x1x128xf32>
    %cst_72 = arith.constant dense<0.000000e+00> : vector<1xf32>
    %223 = vector.multi_reduction <add>, %222, %cst_72 [1, 2] : vector<1x1x128xf32> to vector<1xf32>
    %224 = vector.shape_cast %223 : vector<1xf32> to vector<1x1x1xf32>
    %225 = vector.extract %224[0, 0, 0] : f32 from vector<1x1x1xf32>
    %226 = arith.mulf %225, %217 : f32
    %cst_73 = arith.constant 1.000000e+00 : f32
    %227 = vector.broadcast %cst_73 : f32 to vector<1x128xf32>
    %228 = arith.select %209, %38, %227 : vector<1x128xi1>, vector<1x128xf32>
    %229 = math.log %228 : vector<1x128xf32>
    %230 = vector.shape_cast %229 : vector<1x128xf32> to vector<1x1x128xf32>
    %cst_74 = arith.constant dense<0.000000e+00> : vector<1xf32>
    %231 = vector.multi_reduction <add>, %230, %cst_74 [1, 2] : vector<1x1x128xf32> to vector<1xf32>
    %232 = vector.shape_cast %231 : vector<1xf32> to vector<1x1x1xf32>
    %233 = vector.extract %232[0, 0, 0] : f32 from vector<1x1x1xf32>
    %cst_75 = arith.constant 0.000000e+00 : f32
    %234 = arith.subf %cst_75, %233 : f32
    %235 = arith.mulf %234, %217 : f32
    %c0_76 = arith.constant 0 : index
    %c0_77 = arith.constant 0 : index
    %c0_78 = arith.constant 0 : index
    %236 = vector.load %arg2[%c0_76, %c0_77, %c0_78] : memref<2x1x128xf32, #tpu.memory_space<vmem>>, vector<1x1x128xf32>
    %237 = vector.shape_cast %236 : vector<1x1x128xf32> to vector<1x128xf32>
    %238 = vector.shape_cast %192 : vector<1x128xf32> to vector<1x1x128xf32>
    tpu.vector_store %arg2[%c0_76, %c0_77, %c0_78], %238 {strides = array<i32>} : memref<2x1x128xf32, #tpu.memory_space<vmem>>, vector<1x1x128xf32>,
    %c1_79 = arith.constant 1 : index
    %c0_80 = arith.constant 0 : index
    %c0_81 = arith.constant 0 : index
    %239 = vector.load %arg2[%c1_79, %c0_80, %c0_81] : memref<2x1x128xf32, #tpu.memory_space<vmem>>, vector<1x1x128xf32>
    %240 = vector.shape_cast %239 : vector<1x1x128xf32> to vector<1x128xf32>
    %241 = vector.shape_cast %211 : vector<1x128xf32> to vector<1x1x128xf32>
    tpu.vector_store %arg2[%c1_79, %c0_80, %c0_81], %241 {strides = array<i32>} : memref<2x1x128xf32, #tpu.memory_space<vmem>>, vector<1x1x128xf32>,
    %c0_82 = arith.constant 0 : index
    %242 = memref.load %arg3[%c0_82] : memref<3xf32, #tpu.memory_space<smem>>
    memref.store %226, %arg3[%c0_82] : memref<3xf32, #tpu.memory_space<smem>>
    %c1_83 = arith.constant 1 : index
    %243 = memref.load %arg3[%c1_83] : memref<3xf32, #tpu.memory_space<smem>>
    memref.store %235, %arg3[%c1_83] : memref<3xf32, #tpu.memory_space<smem>>
    return
  }
}

</mosaic_0001>

<llo_original>
// kernel: squeeze.12
$region0: #{squeeze.12}
  %s0 = inlined_call_operand.vmem [shape: f32[2,1,16,16], index: 0, kind: input, shape index: {}]
  %s1 = inlined_call_operand.vmem [shape: f32[2,256], index: 1, kind: output, shape index: {}]
  $region1: #{squeeze.12} parent=0
    #allocation0 [shape = 'u8[8192]{0}', space=vmem, size = 0x2000, scoped, tag = 'scoped mem for output reshape']
    %v2 = vld [vmem:[%s0] ss:$8 sm:$0xf]
    %vm3 = vcmask 130048
    %4 = vst.msk [vmem:[#allocation0] ss:$8 sm:$0x3] %vm3, %v2
    %s5 = scalar_lea.vmem [#allocation0], 4294967281
    %6 = vst.msk [vmem:[%s5] ss:$8 sm:$0xc] %vm3, %v2
    %s7 = scalar_lea.vmem %s0, 7
    %s8 = smov 3
    %v9 = vld [vmem:[%s7] ss:$16 sm:%s8]
    %s10 = scalar_lea.vmem %s0, 4294967279
    %s11 = smov 12
    %v12 = vld [vmem:[%s10] ss:$16 sm:%s11]
    %vm13 = vcmask 1043458
    %v14 = vsel %vm13, %v12, %v9
    %15 = vrot.lane.b32.xlu0 %v14, 112
    %v16 = vpop.permute.xlu0 %15
    %vm17 = vcmask 1048448
    %18 = vst.msk [vmem:[#allocation0] sm:$0x3] %vm17, %v16
    %s19 = scalar_lea.vmem [#allocation0], 6
    %20 = vst.msk [vmem:[%s19] sm:$0xc] %vm17, %v16
    %s21 = scalar_lea.vmem %s0, 6
    %s22 = smov 3
    %v23 = vld [vmem:[%s21] ss:$16 sm:%s22]
    %s24 = scalar_lea.vmem %s0, 4294967278
    %s25 = smov 12
    %v26 = vld [vmem:[%s24] ss:$16 sm:%s25]
    %vm27 = vcmask 1043458
    %v28 = vsel %vm27, %v26, %v23
    %29 = vrot.lane.b32.xlu0 %v28, 96
    %v30 = vpop.permute.xlu0 %29
    %vm31 = vcmask 917248
    %32 = vst.msk [vmem:[#allocation0] sm:$0x3] %vm31, %v30
    %s33 = scalar_lea.vmem [#allocation0], 6
    %34 = vst.msk [vmem:[%s33] sm:$0xc] %vm31, %v30
    %s35 = scalar_lea.vmem %s0, 5
    %s36 = smov 3
    %v37 = vld [vmem:[%s35] ss:$16 sm:%s36]
    %s38 = scalar_lea.vmem %s0, 4294967277
    %s39 = smov 12
    %v40 = vld [vmem:[%s38] ss:$16 sm:%s39]
    %vm41 = vcmask 1043458
    %v42 = vsel %vm41, %v40, %v37
    %43 = vrot.lane.b32.xlu0 %v42, 80
    %v44 = vpop.permute.xlu0 %43
    %vm45 = vcmask 786048
    %46 = vst.msk [vmem:[#allocation0] sm:$0x3] %vm45, %v44
    %s47 = scalar_lea.vmem [#allocation0], 6
    %48 = vst.msk [vmem:[%s47] sm:$0xc] %vm45, %v44
    %s49 = scalar_lea.vmem %s0, 4
    %s50 = smov 3
    %v51 = vld [vmem:[%s49] ss:$16 sm:%s50]
    %s52 = scalar_lea.vmem %s0, 4294967276
    %s53 = smov 12
    %v54 = vld [vmem:[%s52] ss:$16 sm:%s53]
    %vm55 = vcmask 1043458
    %v56 = vsel %vm55, %v54, %v51
    %57 = vrot.lane.b32.xlu0 %v56, 64
    %v58 = vpop.permute.xlu0 %57
    %vm59 = vcmask 654848
    %60 = vst.msk [vmem:[#allocation0] sm:$0x3] %vm59, %v58
    %s61 = scalar_lea.vmem [#allocation0], 6
    %62 = vst.msk [vmem:[%s61] sm:$0xc] %vm59, %v58
    %s63 = scalar_lea.vmem %s0, 3
    %s64 = smov 3
    %v65 = vld [vmem:[%s63] ss:$16 sm:%s64]
    %s66 = scalar_lea.vmem %s0, 4294967275
    %s67 = smov 12
    %v68 = vld [vmem:[%s66] ss:$16 sm:%s67]
    %vm69 = vcmask 1043458
    %v70 = vsel %vm69, %v68, %v65
    %71 = vrot.lane.b32.xlu0 %v70, 48
    %v72 = vpop.permute.xlu0 %71
    %vm73 = vcmask 523648
    %74 = vst.msk [vmem:[#allocation0] sm:$0x3] %vm73, %v72
    %s75 = scalar_lea.vmem [#allocation0], 6
    %76 = vst.msk [vmem:[%s75] sm:$0xc] %vm73, %v72
    %s77 = scalar_lea.vmem %s0, 2
    %s78 = smov 3
    %v79 = vld [vmem:[%s77] ss:$16 sm:%s78]
    %s80 = scalar_lea.vmem %s0, 4294967274
    %s81 = smov 12
    %v82 = vld [vmem:[%s80] ss:$16 sm:%s81]
    %vm83 = vcmask 1043458
    %v84 = vsel %vm83, %v82, %v79
    %85 = vrot.lane.b32.xlu0 %v84, 32
    %v86 = vpop.permute.xlu0 %85
    %vm87 = vcmask 392448
    %88 = vst.msk [vmem:[#allocation0] sm:$0x3] %vm87, %v86
    %s89 = scalar_lea.vmem [#allocation0], 6
    %90 = vst.msk [vmem:[%s89] sm:$0xc] %vm87, %v86
    %s91 = scalar_lea.vmem %s0, 1
    %s92 = smov 3
    %v93 = vld [vmem:[%s91] ss:$16 sm:%s92]
    %s94 = scalar_lea.vmem %s0, 4294967273
    %s95 = smov 12
    %v96 = vld [vmem:[%s94] ss:$16 sm:%s95]
    %vm97 = vcmask 1043458
    %v98 = vsel %vm97, %v96, %v93
    %99 = vrot.lane.b32.xlu0 %v98, 16
    %v100 = vpop.permute.xlu0 %99
    %vm101 = vcmask 261248
    %102 = vst.msk [vmem:[#allocation0] sm:$0x3] %vm101, %v100
    %s103 = scalar_lea.vmem [#allocation0], 6
    %104 = vst.msk [vmem:[%s103] sm:$0xc] %vm101, %v100
    %s106 = sshll.u32 1, 2
    %s107 = ssub.s32 %s106, 1
    %v109 = vld [vmem:[#allocation0] sm:%s107]
    %s110 = sshll.u32 1, 2
    %s111 = ssub.s32 %s110, 1
    %112 = vst [vmem:[%s1] sm:%s111] %v109
    %s113 = scalar_lea.vmem [#allocation0], 8
    %v114 = vld [vmem:[%s113] sm:%s107]
    %s115 = sshll.u32 1, 2
    %s116 = ssub.s32 %s115, 1
    %s117 = scalar_lea.vmem %s1, 2
    %118 = vst [vmem:[%s117] sm:%s116] %v114

// kernel: _detector_loss_impl.1
$region0: #{_detector_loss_impl.1}
  #allocation0 [shape = 'u32[]', space=smem, size = 0x4, offset = 0x4, fixed_abs, tag = 'smem constant byte address 0x4 - core index']
  #allocation1 [shape = 'u32[144,128]{1,0:T(1,128)}', space=vmem, size = 0x12000, scoped, tag = 'internal scratch']
  %s0 = inlined_call_operand.vmem [shape: f32[12,1,128], index: 0, kind: input, shape index: {}]
  %s1 = inlined_call_operand.vmem [shape: f32[2,256], index: 1, kind: input, shape index: {}]
  %s2 = inlined_call_operand.vmem [shape: f32[2,1,128], index: 2, kind: output, shape index: {0}]
  %s3 = inlined_call_operand.vmem [shape: f32[3], index: 3, kind: output, shape index: {1}]
  %4 = xla_tuple %s2, %s3
  %s5 = sld [smem:[#allocation0]]
  $region26: #{_detector_loss_impl.1} parent=0
    _
  %s7 = ssub.s32 1, %s5
  %s8 = scalar_select 0, %s7, %s5
  $region1: #{_detector_loss_impl.1} parent=0
    #allocation2 [shape = 'u8[512]{0}', space=smem, size = 0x200, scoped, tag = 'output window, operand 1, single buffered']
    #allocation3 [shape = 's32[1]{0}', space=sflag, size = 0x4, scoped, tag = 'scoped memory for _detector_loss_impl.1']
    %9 = vsyncpa [#allocation3], 0
    // Predicated region
    $region2: #{_detector_loss_impl.1} parent=1 // pred_check
      _
    $region3: #{_detector_loss_impl.1} parent=1 // pred_check_branch
      %11 = sbr.rel (0) target = $region5
    $region4: #{_detector_loss_impl.1} parent=1 // pred_region
      _
    $region5: #{_detector_loss_impl.1} parent=1 // pred_fallthru
      _
    // Predicated region
    $region6: #{_detector_loss_impl.1} parent=1 // pred_check
      _
    $region7: #{_detector_loss_impl.1} parent=1 // pred_check_branch
      %13 = sbr.rel (0) target = $region9
    $region8: #{_detector_loss_impl.1} parent=1 // pred_region
      _
    $region9: #{_detector_loss_impl.1} parent=1 // pred_fallthru
      _
    %v14 = vld [vmem:[%s1] sm:$0xf]
    %v15 = vand.u32 2147483647, %v14
    %vm16 = vcmp.lt.f32.partialorder %v15, 1.0
    %v17 = vmul.f32 %v14, 0.5
    %v18 = vmul.f32 %v17, %v14
    %v19 = vsub.f32 %v15, 0.5
    %v20 = vsel %vm16, %v18, %v19
    %v21 = vmul.f32 %v20, 0.75
    %v24 = vunpack.c.l.s4 1983009808
    %v25 = vunpack.c.0.s8 %v24
    %v26 = vlaneseq
    %v27 = vshrl.u32 %v26, 7
    %v28 = vsub.s32 %v25, %v27
    %v29 = vrot.slane %v21, %v28
    %v30 = vcombine.high %v29, %v29
    %vm33 = vcmask 1041408
    %v34 = vsel %vm33, %v29, 0.0
    %v35 = vsel %vm33, %v30, 0.0
    %v36 = vadd.f32 %v34, %v35
    %37 = vadd.xlane.f32.xlu0 %v36
    %v38 = vpop.xlane.xlu0 %37
    %v39 = vrot.slane %v38, 4
    %v40 = vadd.f32 %v38, %v39
    %v41 = vrot.slane %v40, 2
    %v42 = vadd.f32 %v40, %v41
    %v43 = vrot.slane %v42, 1
    %v44 = vadd.f32 %v42, %v43
    %s45 = vtos %v44
    %s46 = scalar_lea.smem [#allocation2], 2
    %47 = sst [smem:[%s46]] %s45
    %v48 = vld [vmem:[%s0] sm:$0x1]
    %s49 = scalar_lea.vmem %s0, 1
    %v50 = vld [vmem:[%s49] sm:$0x1]
    %s51 = scalar_lea.vmem %s0, 2
    %v52 = vld [vmem:[%s51] sm:$0x1]
    %s53 = scalar_lea.vmem %s0, 3
    %v54 = vld [vmem:[%s53] sm:$0x1]
    %s55 = scalar_lea.vmem %s0, 4
    %v56 = vld [vmem:[%s55] sm:$0x1]
    %s57 = scalar_lea.vmem %s0, 5
    %v58 = vld [vmem:[%s57] sm:$0x1]
    %s59 = scalar_lea.vmem %s0, 6
    %v60 = vld [vmem:[%s59] sm:$0x1]
    %s61 = scalar_lea.vmem %s0, 7
    %v62 = vld [vmem:[%s61] sm:$0x1]
    %s63 = scalar_lea.vmem %s0, 8
    %v64 = vld [vmem:[%s63] sm:$0x1]
    %s65 = scalar_lea.vmem %s0, 9
    %v66 = vld [vmem:[%s65] sm:$0x1]
    %s67 = scalar_lea.vmem %s0, 10
    %v68 = vld [vmem:[%s67] sm:$0x1]
    %s69 = scalar_lea.vmem %s0, 11
    %v70 = vld [vmem:[%s69] sm:$0x1]
    %v71 = vtanh.pop %v48
    %v72 = vadd.f32 %v71, %v56
    %v73 = vtanh.pop %v50
    %v74 = vadd.f32 %v73, %v58
    %v75 = vxor.u32 %v52, 2147483648
    %v76 = vmul.f32 %v75, 1.442695
    %v77 = vpow.pop %v76
    %v78 = vadd.f32 %v77, 1.0
    %v79 = vrcp.pop %v78
    %v80 = vmul.f32 1.0, %v79
    %v81 = vmul.f32 %v80, 16.0
    %v82 = vxor.u32 %v54, 2147483648
    %v83 = vmul.f32 %v82, 1.442695
    %v84 = vpow.pop %v83
    %v85 = vadd.f32 %v84, 1.0
    %v86 = vrcp.pop %v85
    %v87 = vmul.f32 1.0, %v86
    %v88 = vmul.f32 %v87, 16.0
    %v89 = vmul.f32 %v81, 0.5
    %v90 = vsub.f32 %v72, %v89
    %v91 = vadd.f32 %v72, %v89
    %v92 = vmul.f32 %v88, 0.5
    %v93 = vsub.f32 %v74, %v92
    %v94 = vadd.f32 %v74, %v92
    %v95 = vmul.f32 %v64, 0.5
    %v96 = vsub.f32 %v60, %v95
    %v97 = vadd.f32 %v60, %v95
    %v98 = vmul.f32 %v66, 0.5
    %v99 = vsub.f32 %v62, %v98
    %v100 = vadd.f32 %v62, %v98
    %v101 = vmin.f32 %v91, %v97
    %v102 = vmax.f32 %v90, %v96
    %v103 = vsub.f32 %v101, %v102
    %v104 = vmax.f32 %v103, 0.0
    %v105 = vmin.f32 %v94, %v100
    %v106 = vmax.f32 %v93, %v99
    %v107 = vsub.f32 %v105, %v106
    %v108 = vmax.f32 %v107, 0.0
    %v109 = vmul.f32 %v104, %v108
    %v110 = vsub.f32 %v91, %v90
    %v111 = vsub.f32 %v94, %v93
    %v112 = vadd.f32 %v111, 1e-07
    %v113 = vsub.f32 %v97, %v96
    %v114 = vsub.f32 %v100, %v99
    %v115 = vadd.f32 %v114, 1e-07
    %v116 = vmul.f32 %v110, %v112
    %v117 = vmul.f32 %v113, %v115
    %v118 = vadd.f32 %v116, %v117
    %v119 = vsub.f32 %v118, %v109
    %v120 = vadd.f32 %v119, 1e-07
    %v121 = vrcp.pop %v120
    %v122 = vmul.f32 %v109, %v121
    %v123 = vmax.f32 %v91, %v97
    %v124 = vmin.f32 %v90, %v96
    %v125 = vsub.f32 %v123, %v124
    %v126 = vmax.f32 %v94, %v100
    %v127 = vmin.f32 %v93, %v99
    %v128 = vsub.f32 %v126, %v127
    %v129 = vadd.f32 %v96, %v97
    %v130 = vsub.f32 %v129, %v90
    %v131 = vsub.f32 %v130, %v91
    %v132 = vmul.f32 %v131, 0.5
    %v133 = vadd.f32 %v99, %v100
    %v134 = vsub.f32 %v133, %v93
    %v135 = vsub.f32 %v134, %v94
    %v136 = vmul.f32 %v135, 0.5
    %v137 = vmul.f32 %v132, %v132
    %v138 = vmul.f32 %v136, %v136
    %v139 = vadd.f32 %v137, %v138
    %v140 = vrsqrt.pop %v139
    %v141 = vmul.f32 %v139, %v140
    %vm142 = vcmp.eq.f32.partialorder %v139, inf
    %v143 = vsel %vm142, %v139, %v141
    %vm144 = vcmp.eq.f32.partialorder %v139, 0.0
    %v145 = vand.u32 %v139, 2147483648
    %v146 = vsel %vm144, %v145, %v143
    %v147 = vadd.f32 %v146, 1e-07
    %v148 = vrcp.pop %v147
    %v149 = vand.u32 2147483647, %v132
    %v150 = vmul.f32 %v149, %v148
    %v151 = vand.u32 2147483647, %v136
    %v152 = vmul.f32 %v151, %v148
    %vm153 = vcmp.gt.f32.partialorder %v150, 0.70710677
    %v154 = vsel %vm153, %v152, %v150
    %v155 = vmul.f32 %v154, 2.0
    %v156 = vmul.f32 %v154, %v154
    %v157 = vsub.f32 1.0, %v156
    %v158 = vmax.f32 %v157, 0.0
    %v159 = vrsqrt.pop %v158
    %v160 = vmul.f32 %v158, %v159
    %vm161 = vcmp.eq.f32.partialorder %v158, inf
    %v162 = vsel %vm161, %v158, %v160
    %vm163 = vcmp.eq.f32.partialorder %v158, 0.0
    %v164 = vand.u32 %v158, 2147483648
    %v165 = vsel %vm163, %v164, %v162
    %v166 = vmul.f32 %v155, %v165
    %v167 = vrcp.pop %v125
    %v168 = vmul.f32 %v132, %v167
    %v169 = vmul.f32 %v168, %v168
    %v170 = vrcp.pop %v128
    %v171 = vmul.f32 %v136, %v170
    %v172 = vmul.f32 %v171, %v171
    %v173 = vsub.f32 %v166, 2.0
    %v174 = vmul.f32 %v173, %v169
    %v175 = vmul.f32 %v174, 1.442695
    %v176 = vpow.pop %v175
    %v177 = vsub.f32 2.0, %v176
    %v178 = vmul.f32 %v173, %v172
    %v179 = vmul.f32 %v178, 1.442695
    %v180 = vpow.pop %v179
    %v181 = vsub.f32 %v177, %v180
    %v182 = vsub.f32 %v110, %v113
    %v183 = vand.u32 2147483647, %v182
    %v184 = vmax.f32 %v110, %v113
    %v185 = vrcp.pop %v184
    %v186 = vmul.f32 %v183, %v185
    %v187 = vsub.f32 %v112, %v115
    %v188 = vand.u32 2147483647, %v187
    %v189 = vmax.f32 %v112, %v115
    %v190 = vrcp.pop %v189
    %v191 = vmul.f32 %v188, %v190
    %v192 = vsub.f32 0.0, %v186
    %v193 = vmul.f32 %v192, 1.442695
    %v194 = vpow.pop %v193
    %v195 = vsub.f32 1.0, %v194
    %v196 = vmul.f32 %v195, %v195
    %v197 = vmul.f32 %v196, %v196
    %v198 = vsub.f32 0.0, %v191
    %v199 = vmul.f32 %v198, 1.442695
    %v200 = vpow.pop %v199
    %v201 = vsub.f32 1.0, %v200
    %v202 = vmul.f32 %v201, %v201
    %v203 = vmul.f32 %v202, %v202
    %v204 = vadd.f32 %v197, %v203
    %v205 = vadd.f32 %v181, %v204
    %v206 = vmul.f32 %v205, 0.5
    %v207 = vsub.f32 %v122, %v206
    %vm208 = vcmp.gt.f32.partialorder %v70, 0.0
    %vm209 = vcmask 1040384
    %v210 = vsel %vm209, %v70, 0.0
    %211 = vadd.xlane.f32.xlu0 %v210
    %v212 = vpop.xlane.xlu0 %211
    %v213 = vrot.slane %v212, 4
    %v214 = vadd.f32 %v212, %v213
    %v215 = vrot.slane %v214, 2
    %v216 = vadd.f32 %v214, %v215
    %v217 = vrot.slane %v216, 1
    %v218 = vadd.f32 %v216, %v217
    %s219 = vtos %v218
    %s220 = smax.f32 %s219, 1.0
    %v221 = vsel %vm208, %v207, 0.0
    %v222 = vsel %vm209, %v221, 0.0
    %223 = vadd.xlane.f32.xlu0 %v222
    %v224 = vpop.xlane.xlu0 %223
    %v225 = vrot.slane %v224, 4
    %v226 = vadd.f32 %v224, %v225
    %v227 = vrot.slane %v226, 2
    %v228 = vadd.f32 %v226, %v227
    %v229 = vrot.slane %v228, 1
    %v230 = vadd.f32 %v228, %v229
    %s231 = vtos %v230
    %v232 = vstv %s220
    %v233 = vrcp.pop %v232
    %s234 = vtos %v233
    %s235 = smul.f32 %s231, %s234
    %v236 = vstv %s235
    %vm237 = vcmp.gt.f32.partialorder %v207, %v236
    %vm238 = vmand %vm237, %vm208
    %v239 = vsel %vm238, 1, 0
    %v240 = vcvt.s32.f32 %v239
    %v241 = vsel %vm209, %v240, 0.0
    %242 = vadd.xlane.f32.xlu0 %v241
    %v243 = vpop.xlane.xlu0 %242
    %v244 = vrot.slane %v243, 4
    %v245 = vadd.f32 %v243, %v244
    %v246 = vrot.slane %v245, 2
    %v247 = vadd.f32 %v245, %v246
    %v248 = vrot.slane %v247, 1
    %v249 = vadd.f32 %v247, %v248
    %s250 = vtos %v249
    %s251 = smax.f32 %s250, 1.0
    %v252 = vstv %s251
    %v253 = vrcp.pop %v252
    %s254 = vtos %v253
    %v255 = vsub.f32 1.0, %v207
    %v256 = vsel %vm238, %v255, 0.0
    %v257 = vsel %vm209, %v256, 0.0
    %258 = vadd.xlane.f32.xlu0 %v257
    %v259 = vpop.xlane.xlu0 %258
    %v260 = vrot.slane %v259, 4
    %v261 = vadd.f32 %v259, %v260
    %v262 = vrot.slane %v261, 2
    %v263 = vadd.f32 %v261, %v262
    %v264 = vrot.slane %v263, 1
    %v265 = vadd.f32 %v263, %v264
    %s266 = vtos %v265
    %s267 = smul.f32 %s266, %s254
    %v268 = vsel %vm238, %v68, 1.0
    %v269 = vlog2.pop %v268
    %v270 = vmul.f32 %v269, 0.6931472
    %v271 = vsel %vm209, %v270, 0.0
    %272 = vadd.xlane.f32.xlu0 %v271
    %v273 = vpop.xlane.xlu0 %272
    %v274 = vrot.slane %v273, 4
    %v275 = vadd.f32 %v273, %v274
    %v276 = vrot.slane %v275, 2
    %v277 = vadd.f32 %v275, %v276
    %v278 = vrot.slane %v277, 1
    %v279 = vadd.f32 %v277, %v278
    %s280 = vtos %v279
    %s281 = ssub.f32 0.0, %s280
    %s282 = smul.f32 %s281, %s254
    %283 = vst [vmem:[%s2] sm:$0x1] %v207
    %s284 = scalar_lea.vmem %s2, 1
    %285 = vst [vmem:[%s284] sm:$0x1] %v240
    %s286 = scalar_lea.smem [#allocation2], 0
    %287 = sst [smem:[%s286]] %s267
    %s288 = scalar_lea.smem [#allocation2], 1
    %289 = sst [smem:[%s288]] %s282
    // Predicated region
    $region10: #{_detector_loss_impl.1} parent=1 // pred_check
      _
    $region11: #{_detector_loss_impl.1} parent=1 // pred_check_branch
      %291 = sbr.rel (0) target = $region13
    $region12: #{_detector_loss_impl.1} parent=1 // pred_region
      _
    $region13: #{_detector_loss_impl.1} parent=1 // pred_fallthru
      _
    // Predicated region
    $region14: #{_detector_loss_impl.1} parent=1 // pred_check
      _
    $region15: #{_detector_loss_impl.1} parent=1 // pred_check_branch
      %293 = sbr.rel (0) target = $region17
    $region16: #{_detector_loss_impl.1} parent=1 // pred_region
      %s295 = ssub.s32 16, 16
      %296 = vsyncadd [#allocation3], %s295
      %s298 = sshll.u32 %s3, 4
      %s299 = int_to_ptr.vmem [resolvable:$true] %s298
      %301 = dma.smem_to_vmem [#allocation2], 16, %s299, [#allocation3]
    $region17: #{_detector_loss_impl.1} parent=1 // pred_fallthru
      _
    // Predicated region
    $region18: #{_detector_loss_impl.1} parent=1 // pred_check
      _
    $region19: #{_detector_loss_impl.1} parent=1 // pred_check_branch
      %303 = sbr.rel (0) target = $region21
    $region20: #{_detector_loss_impl.1} parent=1 // pred_region
      _
    $region21: #{_detector_loss_impl.1} parent=1 // pred_fallthru
      _
    // Predicated region
    $region22: #{_detector_loss_impl.1} parent=1 // pred_check
      _
    $region23: #{_detector_loss_impl.1} parent=1 // pred_check_branch
      %305 = sbr.rel (0) target = $region25
    $region24: #{_detector_loss_impl.1} parent=1 // pred_region
      %306 = dma.done [#allocation3], 16
    $region25: #{_detector_loss_impl.1} parent=1 // pred_fallthru
      _
    %307 = sfence
    %308 = vsyncpa [#allocation3], 1

</llo_original>
